<compile_context>
chip_gen: v5e
topology: v5e:2x2
jax: 0.10.0
libtpu: 0.0.40
codegen_flags: <defaults>
</compile_context>

<pallas_src>
import functools

import jax
import jax.numpy as jnp
from jax.experimental import pallas as pl
from jax.experimental.pallas import tpu as pltpu


def _round_up(x, m):
    return ((x + m - 1) // m) * m


def _ln_lmhead_kernel(x_ref, g_ref, b_ref, w_ref, o_ref, y_ref, *, eps):
    # x_ref: (tm, H) rows; g_ref/b_ref: (1, H); w_ref: (tv, H) torch-layout tile;
    # o_ref: (tm, tv); y_ref: VMEM scratch (tm, H) in the matmul dtype (bf16).

    # LayerNorm hoisted out of the vocab loop: only on the first vocab step
    # of each row tile (vocab axis is the innermost / fastest grid axis).
    @pl.when(pl.program_id(1) == 0)
    def _():
        x = x_ref[...].astype(jnp.float32)
        mean = jnp.mean(x, axis=-1, keepdims=True)
        var = jnp.mean(jnp.square(x - mean), axis=-1, keepdims=True)  # biased, like torch LN
        x_hat = (x - mean) * jax.lax.rsqrt(var + eps)
        y = x_hat * g_ref[...].astype(jnp.float32) + b_ref[...].astype(jnp.float32)
        y_ref[...] = y.astype(y_ref.dtype)

    # NT matmul on the MXU: contract over H (last dim of both operands), so the
    # weight stays in its [V, H] layout and no transpose copy is ever made.
    o_ref[...] = jax.lax.dot_general(
        y_ref[...],
        w_ref[...],
        dimension_numbers=(((1,), (1,)), ((), ())),
        preferred_element_type=jnp.float32,
    ).astype(o_ref.dtype)


def gpt2_postprocessing(hidden_states, gamma, beta, lm_head_weight,
                        *, eps=1e-5, tm=256, tv=512,
                        matmul_dtype=jnp.bfloat16):
    """hidden_states: [B, S, H]; gamma/beta: [H]; lm_head_weight: [V, H] (torch layout)."""
    B, S, H = hidden_states.shape
    V = lm_head_weight.shape[0]
    M = B * S

    # Tile sizes: clamp to the (padded) problem, keep (8, 128) alignment.
    tm = max(8, min(tm, _round_up(M, 8)))
    tv = max(128, min(tv, _round_up(V, 128)))
    Mp = _round_up(M, tm)
    Vp = _round_up(V, tv)

    x2d = hidden_states.reshape(M, H)
    if Mp != M:
        x2d = jnp.pad(x2d, ((0, Mp - M), (0, 0)))

    # bf16 weights: feed the MXU its native dtype and halve weight HBM traffic.
    w = lm_head_weight.astype(matmul_dtype)  # keep [V, H]; no transpose
    if Vp != V:
        w = jnp.pad(w, ((0, Vp - V), (0, 0)))

    g2d = gamma.reshape(1, H)
    b2d = beta.reshape(1, H)

    out_dtype = hidden_states.dtype
    flops = 2 * Mp * H * Vp
    bytes_accessed = int(
        Mp * H * x2d.dtype.itemsize
        + Vp * H * w.dtype.itemsize
        + Mp * Vp * jnp.dtype(out_dtype).itemsize
    )

    out = pl.pallas_call(
        functools.partial(_ln_lmhead_kernel, eps=eps),
        out_shape=jax.ShapeDtypeStruct((Mp, Vp), out_dtype),
        grid_spec=pltpu.PrefetchScalarGridSpec(
            num_scalar_prefetch=0,
            grid=(Mp // tm, Vp // tv),  # vocab axis innermost
            in_specs=[
                pl.BlockSpec((tm, H), lambda i, j: (i, 0)),    # row tile
                pl.BlockSpec((1, H), lambda i, j: (0, 0)),     # gamma
                pl.BlockSpec((1, H), lambda i, j: (0, 0)),     # beta
                pl.BlockSpec((tv, H), lambda i, j: (j, 0)),    # weight tile [tv, H]
            ],
            out_specs=pl.BlockSpec((tm, tv), lambda i, j: (i, j)),
            scratch_shapes=[pltpu.VMEM((tm, H), matmul_dtype)],  # cached LN(x)
        ),
        compiler_params=pltpu.CompilerParams(
            # vocab axis carries the cached LN result -> must be sequential.
            dimension_semantics=("parallel", "arbitrary"),
        ),
        cost_estimate=pl.CostEstimate(
            flops=flops, transcendentals=Mp, bytes_accessed=bytes_accessed
        ),
    )(x2d, g2d, b2d, w)

    if Mp != M or Vp != V:
        out = out[:M, :V]
    return out.reshape(B, S, V)


def _reference_f32(hidden_states, gamma, beta, lm_head_weight, eps=1e-5):
    x = hidden_states.astype(jnp.float32)
    mean = jnp.mean(x, axis=-1, keepdims=True)
    var = jnp.mean(jnp.square(x - mean), axis=-1, keepdims=True)
    x_hat = (x - mean) / jnp.sqrt(var + eps)
    y = x_hat * gamma + beta
    return y @ lm_head_weight.T


def _reference_bf16_matmul(hidden_states, gamma, beta, lm_head_weight, eps=1e-5):
    # Matches the kernel's numerics: LN in f32, bf16 operands, f32 accumulation.
    x = hidden_states.astype(jnp.float32)
    mean = jnp.mean(x, axis=-1, keepdims=True)
    var = jnp.mean(jnp.square(x - mean), axis=-1, keepdims=True)
    x_hat = (x - mean) / jnp.sqrt(var + eps)
    y = (x_hat * gamma + beta).astype(jnp.bfloat16).astype(jnp.float32)
    w = lm_head_weight.astype(jnp.bfloat16).astype(jnp.float32)
    return y @ w.T


if __name__ == "__main__":
    # Small GPT2-like config: batch=2, seq=8, hidden=32, vocab=256
    B, S, H, V = 2, 8, 32, 256
    eps = 1e-5

    key = jax.random.PRNGKey(0)
    k_x, k_g, k_b, k_w = jax.random.split(key, 4)

    hidden_states = jax.random.normal(k_x, (B, S, H), dtype=jnp.float32)
    gamma = jnp.ones((H,), jnp.float32) + 0.01 * jax.random.normal(k_g, (H,), jnp.float32)
    beta = 0.01 * jax.random.normal(k_b, (H,), jnp.float32)
    lm_head_weight = 0.02 * jax.random.normal(k_w, (V, H), dtype=jnp.float32)  # torch [V, H]

    logits = gpt2_postprocessing(hidden_states, gamma, beta, lm_head_weight, eps=eps)
    logits = jax.block_until_ready(logits)
    assert logits.shape == (B, S, V)

    # Tight check against a reference that mirrors the kernel's bf16 MXU path.
    ref_bf16 = _reference_bf16_matmul(hidden_states, gamma, beta, lm_head_weight, eps=eps)
    assert jnp.allclose(logits, ref_bf16, atol=1e-4, rtol=1e-4), "mismatch vs bf16-aware reference"

    # Loose sanity check against the full-f32 PyTorch-equivalent reference.
    ref_f32 = _reference_f32(hidden_states, gamma, beta, lm_head_weight, eps=eps)
    assert jnp.allclose(logits, ref_f32, atol=2e-2, rtol=2e-2), "mismatch vs f32 reference"

    print("KERNEL_OK")
</pallas_src>

<mosaic_0001>
module attributes {stable_mosaic.version = 11 : i64} {
  func.func @_ln_lmhead_kernel(%arg0: i32, %arg1: i32, %arg2: memref<16x32xf32, #tpu.memory_space<vmem>>, %arg3: memref<1x32xf32, #tpu.memory_space<vmem>>, %arg4: memref<1x32xf32, #tpu.memory_space<vmem>>, %arg5: memref<256x32xbf16, #tpu.memory_space<vmem>>, %arg6: memref<16x256xf32, #tpu.memory_space<vmem>>, %arg7: memref<16x32xbf16, #tpu.memory_space<vmem>>) attributes {dimension_semantics = [#tpu.dimension_semantics<parallel>, #tpu.dimension_semantics<arbitrary>], iteration_bounds = array<i64: 1, 1>, scalar_prefetch = 0 : i64, scratch_operands = 1 : i64, tpu.core_type = #tpu.core_type<tc>, window_params = [{transform_indices = @transform_0, window_bounds = array<i64: 16, 32>}, {pipeline_mode = #tpu.pipeline_mode<synchronous>, transform_indices = @transform_1, window_bounds = array<i64: 1, 32>}, {pipeline_mode = #tpu.pipeline_mode<synchronous>, transform_indices = @transform_2, window_bounds = array<i64: 1, 32>}, {transform_indices = @transform_3, window_bounds = array<i64: 256, 32>}, {transform_indices = @transform_4, window_bounds = array<i64: 16, 256>}]} {
    %c0_i32 = arith.constant 0 : i32
    %0 = arith.cmpi eq, %arg1, %c0_i32 : i32
    %1 = arith.extui %0 : i1 to i32
    %c0_i32_0 = arith.constant 0 : i32
    %2 = arith.cmpi ne, %1, %c0_i32_0 : i32
    scf.if %2 {
      %c0_6 = arith.constant 0 : index
      %c0_7 = arith.constant 0 : index
      %7 = vector.load %arg2[%c0_6, %c0_7] : memref<16x32xf32, #tpu.memory_space<vmem>>, vector<16x32xf32>
      %cst_8 = arith.constant dense<0.000000e+00> : vector<16xf32>
      %8 = vector.multi_reduction <add>, %7, %cst_8 [1] : vector<16x32xf32> to vector<16xf32>
      %9 = vector.shape_cast %8 : vector<16xf32> to vector<16x1xf32>
      %cst_9 = arith.constant 3.200000e+01 : f32
      %10 = vector.broadcast %cst_9 : f32 to vector<16x1xf32>
      %11 = arith.divf %9, %10 : vector<16x1xf32>
      %12 = vector.broadcast %11 : vector<16x1xf32> to vector<16x32xf32>
      %13 = arith.subf %7, %12 : vector<16x32xf32>
      %14 = arith.mulf %13, %13 : vector<16x32xf32>
      %cst_10 = arith.constant dense<0.000000e+00> : vector<16xf32>
      %15 = vector.multi_reduction <add>, %14, %cst_10 [1] : vector<16x32xf32> to vector<16xf32>
      %16 = vector.shape_cast %15 : vector<16xf32> to vector<16x1xf32>
      %cst_11 = arith.constant 3.200000e+01 : f32
      %17 = vector.broadcast %cst_11 : f32 to vector<16x1xf32>
      %18 = arith.divf %16, %17 : vector<16x1xf32>
      %19 = vector.broadcast %11 : vector<16x1xf32> to vector<16x32xf32>
      %20 = arith.subf %7, %19 : vector<16x32xf32>
      %cst_12 = arith.constant 9.99999974E-6 : f32
      %21 = vector.broadcast %cst_12 : f32 to vector<16x1xf32>
      %22 = arith.addf %18, %21 : vector<16x1xf32>
      %23 = math.rsqrt %22 : vector<16x1xf32>
      %24 = vector.broadcast %23 : vector<16x1xf32> to vector<16x32xf32>
      %25 = arith.mulf %20, %24 : vector<16x32xf32>
      %c0_13 = arith.constant 0 : index
      %c0_14 = arith.constant 0 : index
      %26 = vector.load %arg3[%c0_13, %c0_14] : memref<1x32xf32, #tpu.memory_space<vmem>>, vector<1x32xf32>
      %27 = vector.broadcast %26 : vector<1x32xf32> to vector<16x32xf32>
      %28 = arith.mulf %25, %27 : vector<16x32xf32>
      %c0_15 = arith.constant 0 : index
      %c0_16 = arith.constant 0 : index
      %29 = vector.load %arg4[%c0_15, %c0_16] : memref<1x32xf32, #tpu.memory_space<vmem>>, vector<1x32xf32>
      %30 = vector.broadcast %29 : vector<1x32xf32> to vector<16x32xf32>
      %31 = arith.addf %28, %30 : vector<16x32xf32>
      %32 = arith.truncf %31 : vector<16x32xf32> to vector<16x32xbf16>
      %c0_17 = arith.constant 0 : index
      %c0_18 = arith.constant 0 : index
      %33 = vector.load %arg7[%c0_17, %c0_18] : memref<16x32xbf16, #tpu.memory_space<vmem>>, vector<16x32xbf16>
      tpu.vector_store %arg7[%c0_17, %c0_18], %32 {strides = array<i32>} : memref<16x32xbf16, #tpu.memory_space<vmem>>, vector<16x32xbf16>,
    } else {
    }
    %c0 = arith.constant 0 : index
    %c0_1 = arith.constant 0 : index
    %3 = vector.load %arg7[%c0, %c0_1] : memref<16x32xbf16, #tpu.memory_space<vmem>>, vector<16x32xbf16>
    %c0_2 = arith.constant 0 : index
    %c0_3 = arith.constant 0 : index
    %4 = vector.load %arg5[%c0_2, %c0_3] : memref<256x32xbf16, #tpu.memory_space<vmem>>, vector<256x32xbf16>
    %cst = arith.constant dense<0.000000e+00> : vector<16x256xf32>
    %5 = tpu.matmul %3, %4, %cst {dimension_numbers = #tpu.dot_dimension_numbers<[1], [1], [0], [0], [0, 0, 1, 0], [], []>} : vector<16x32xbf16>, vector<256x32xbf16>, vector<16x256xf32> -> vector<16x256xf32>
    %c0_4 = arith.constant 0 : index
    %c0_5 = arith.constant 0 : index
    %6 = vector.load %arg6[%c0_4, %c0_5] : memref<16x256xf32, #tpu.memory_space<vmem>>, vector<16x256xf32>
    tpu.vector_store %arg6[%c0_4, %c0_5], %5 {strides = array<i32>} : memref<16x256xf32, #tpu.memory_space<vmem>>, vector<16x256xf32>,
    return
  }
  func.func @transform_0(%arg0: i32, %arg1: i32) -> (i32, i32) {
    %c0_i32 = arith.constant 0 : i32
    %c0_i32_0 = arith.constant 0 : i32
    return %arg0, %c0_i32 : i32, i32
  }
  func.func @transform_1(%arg0: i32, %arg1: i32) -> (i32, i32) {
    %c0_i32 = arith.constant 0 : i32
    %c0_i32_0 = arith.constant 0 : i32
    %c0_i32_1 = arith.constant 0 : i32
    return %c0_i32, %c0_i32_0 : i32, i32
  }
  func.func @transform_2(%arg0: i32, %arg1: i32) -> (i32, i32) {
    %c0_i32 = arith.constant 0 : i32
    %c0_i32_0 = arith.constant 0 : i32
    %c0_i32_1 = arith.constant 0 : i32
    return %c0_i32, %c0_i32_0 : i32, i32
  }
  func.func @transform_3(%arg0: i32, %arg1: i32) -> (i32, i32) {
    %c0_i32 = arith.constant 0 : i32
    %c0_i32_0 = arith.constant 0 : i32
    return %arg1, %c0_i32 : i32, i32
  }
  func.func @transform_4(%arg0: i32, %arg1: i32) -> (i32, i32) {
    %c0_i32 = arith.constant 0 : i32
    return %arg0, %arg1 : i32, i32
  }
}

</mosaic_0001>

<llo_original>
// kernel: tpu_custom_call.1
$region0: #{tpu_custom_call.1}
  #allocation0 [shape = 'u32[]', space=smem, size = 0x4, offset = 0x4, fixed_abs, tag = 'smem constant byte address 0x4 - core index']
  #allocation1 [shape = 'u32[72,128]{1,0:T(1,128)}', space=vmem, size = 0x9000, scoped, tag = 'internal scratch']
  #allocation2 [shape = 'bf16[16,32]{1,0:T(8,128)(2,1)}', space=vmem, size = 0x1000, scoped, tag = 'scratch operand']
  %s0 = inlined_call_operand.vmem [shape: f32[16,32], index: 0, kind: input, shape index: {}]
  %s1 = inlined_call_operand.vmem [shape: f32[1,32], index: 1, kind: input, shape index: {}]
  %s2 = inlined_call_operand.vmem [shape: f32[1,32], index: 2, kind: input, shape index: {}]
  %s3 = inlined_call_operand.vmem [shape: bf16[256,32], index: 3, kind: input, shape index: {}]
  %s4 = inlined_call_operand.hbm [shape: f32[16,256], index: 4, kind: output, shape index: {}]
  %s5 = sld [smem:[#allocation0]]
  $region30: #{tpu_custom_call.1} parent=0
    _
  %s7 = ssub.s32 1, %s5
  %s8 = scalar_select 0, %s7, %s5
  $region1: #{tpu_custom_call.1} parent=0
    #allocation3 [shape = 'u8[16384]{0}', space=vmem, size = 0x4000, scoped, tag = 'output window, operand 0, single buffered']
    #allocation4 [shape = 's32[1]{0}', space=sflag, size = 0x4, scoped, tag = 'scoped memory for tpu_custom_call.1']
    %9 = vsyncpa [#allocation4], 0
    // Predicated region
    $region2: #{tpu_custom_call.1} parent=1 // pred_check
      _
    $region3: #{tpu_custom_call.1} parent=1 // pred_check_branch
      %11 = sbr.rel (0) target = $region5
    $region4: #{tpu_custom_call.1} parent=1 // pred_region
      _
    $region5: #{tpu_custom_call.1} parent=1 // pred_fallthru
      _
    // Predicated region
    $region6: #{tpu_custom_call.1} parent=1 // pred_check
      _
    $region7: #{tpu_custom_call.1} parent=1 // pred_check_branch
      %13 = sbr.rel (0) target = $region9
    $region8: #{tpu_custom_call.1} parent=1 // pred_region
      _
    $region9: #{tpu_custom_call.1} parent=1 // pred_fallthru
      _
    // Predicated region
    $region10: #{tpu_custom_call.1} parent=1 // pred_check
      _
    $region11: #{tpu_custom_call.1} parent=1 // pred_check_branch
      %15 = sbr.rel (0) target = $region13
    $region12: #{tpu_custom_call.1} parent=1 // pred_region
      _
    $region13: #{tpu_custom_call.1} parent=1 // pred_fallthru
      _
    // Predicated region
    $region14: #{tpu_custom_call.1} parent=1 // pred_check
      _
    $region15: #{tpu_custom_call.1} parent=1 // pred_check_branch
      %17 = sbr.rel (0) target = $region17
    $region16: #{tpu_custom_call.1} parent=1 // pred_region
      _
    $region17: #{tpu_custom_call.1} parent=1 // pred_fallthru
      _
    %p18 = scmp.eq.s32.totalorder 0, 0
    // Predicated region
    $region18: #{tpu_custom_call.1} parent=1 // pred_check
      %p19 = pneg %p18
    $region19: #{tpu_custom_call.1} parent=1 // pred_check_branch
      %21 = sbr.rel (%p19) target = $region21
    $region20: #{tpu_custom_call.1} parent=1 // pred_region
      %v22 = vld [vmem:[%s0] sm:$0xff]
      %v23 = vld [vmem:[%s0 + $0x8] sm:$0xff]
      %vm24 = vcmask 261120
      %v25 = vsel %vm24, %v22, 0.0
      %26 = vadd.xlane.f32.xlu0 %v25
      %v27 = vpop.xlane.xlu0 %26
      %v28 = vsel %vm24, %v23, 0.0
      %29 = vadd.xlane.f32.xlu0 %v28
      %v30 = vpop.xlane.xlu0 %29
      %v31 = vrcp.pop 32.0
      %v32 = vmul.f32 32.0, %v31
      %v33 = vsub.f32 1.0, %v32
      %v34 = vmul.f32 %v31, %v33
      %v35 = vadd.f32 %v31, %v34
      %vm36 = vweird.f32 %v31
      %v37 = vsel %vm36, %v31, %v35
      %v38 = vmul.f32 %v27, %v37
      %v39 = vmul.f32 %v30, %v37
      %v40 = vsub.f32 %v22, %v38
      %v41 = vsub.f32 %v23, %v39
      %v42 = vmul.f32 %v40, %v40
      %v43 = vmul.f32 %v41, %v41
      %v44 = vsel %vm24, %v42, 0.0
      %45 = vadd.xlane.f32.xlu0 %v44
      %v46 = vpop.xlane.xlu0 %45
      %v47 = vsel %vm24, %v43, 0.0
      %48 = vadd.xlane.f32.xlu0 %v47
      %v49 = vpop.xlane.xlu0 %48
      %v50 = vmul.f32 %v46, %v37
      %v51 = vmul.f32 %v49, %v37
      %v52 = vadd.f32 %v50, 1e-05
      %v53 = vadd.f32 %v51, 1e-05
      %v54 = vrsqrt.pop %v52
      %v55 = vmul.f32 %v54, %v52
      %v56 = vmul.f32 %v55, %v54
      %v57 = vmul.f32 0.5, %v56
      %v58 = vsub.f32 1.5, %v57
      %v59 = vmul.f32 %v54, %v58
      %vm60 = vweird.f32 %v52
      %vm61 = vweird.f32 %v54
      %vm62 = vmor %vm60, %vm61
      %v63 = vsel %vm62, %v54, %v59
      %v64 = vrsqrt.pop %v53
      %v65 = vmul.f32 %v64, %v53
      %v66 = vmul.f32 %v65, %v64
      %v67 = vmul.f32 0.5, %v66
      %v68 = vsub.f32 1.5, %v67
      %v69 = vmul.f32 %v64, %v68
      %vm70 = vweird.f32 %v53
      %vm71 = vweird.f32 %v64
      %vm72 = vmor %vm70, %vm71
      %v73 = vsel %vm72, %v64, %v69
      %v74 = vmul.f32 %v40, %v63
      %v75 = vmul.f32 %v41, %v73
      %v76 = vld [vmem:[%s1] sm:$0x1]
      %v78 = vperm.slane %v76, 0
      %v80 = vmul.f32 %v74, %v78
      %v81 = vmul.f32 %v75, %v78
      %v82 = vld [vmem:[%s2] sm:$0x1]
      %v84 = vperm.slane %v82, 0
      %v86 = vadd.f32 %v80, %v84
      %v87 = vadd.f32 %v81, %v84
      %v88 = vpack.c.bf16 %v86, %v86
      %v89 = vpack.c.bf16 %v87, %v87
      %vm90 = vcmask 257024
      %91 = vst.msk [vmem:[#allocation2] sm:$0xf] %vm90, %v88
      %92 = vst.msk [vmem:[#allocation2 + $0x4] sm:$0xf] %vm90, %v89
    $region21: #{tpu_custom_call.1} parent=1 // pred_fallthru
      _
    %v93 = vld [vmem:[#allocation2] sm:$0xf]
    %v94 = vld [vmem:[#allocation2 + $0x4] sm:$0xf]
    %v95 = vld [vmem:[%s3] sm:$0xf]
    %v96 = vld [vmem:[%s3 + $0x4] sm:$0xf]
    %v97 = vld [vmem:[%s3 + $0x8] sm:$0xf]
    %v98 = vld [vmem:[%s3 + $0xc] sm:$0xf]
    %v99 = vld [vmem:[%s3 + $0x10] sm:$0xf]
    %v100 = vld [vmem:[%s3 + $0x14] sm:$0xf]
    %v101 = vld [vmem:[%s3 + $0x18] sm:$0xf]
    %v102 = vld [vmem:[%s3 + $0x1c] sm:$0xf]
    %v103 = vld [vmem:[%s3 + $0x20] sm:$0xf]
    %v104 = vld [vmem:[%s3 + $0x24] sm:$0xf]
    %v105 = vld [vmem:[%s3 + $0x28] sm:$0xf]
    %v106 = vld [vmem:[%s3 + $0x2c] sm:$0xf]
    %v107 = vld [vmem:[%s3 + $0x30] sm:$0xf]
    %v108 = vld [vmem:[%s3 + $0x34] sm:$0xf]
    %v109 = vld [vmem:[%s3 + $0x38] sm:$0xf]
    %v110 = vld [vmem:[%s3 + $0x3c] sm:$0xf]
    %v111 = vld [vmem:[%s3 + $0x40] sm:$0xf]
    %v112 = vld [vmem:[%s3 + $0x44] sm:$0xf]
    %v113 = vld [vmem:[%s3 + $0x48] sm:$0xf]
    %v114 = vld [vmem:[%s3 + $0x4c] sm:$0xf]
    %v115 = vld [vmem:[%s3 + $0x50] sm:$0xf]
    %v116 = vld [vmem:[%s3 + $0x54] sm:$0xf]
    %v117 = vld [vmem:[%s3 + $0x58] sm:$0xf]
    %v118 = vld [vmem:[%s3 + $0x5c] sm:$0xf]
    %v119 = vld [vmem:[%s3 + $0x60] sm:$0xf]
    %v120 = vld [vmem:[%s3 + $0x64] sm:$0xf]
    %v121 = vld [vmem:[%s3 + $0x68] sm:$0xf]
    %v122 = vld [vmem:[%s3 + $0x6c] sm:$0xf]
    %v123 = vld [vmem:[%s3 + $0x70] sm:$0xf]
    %v124 = vld [vmem:[%s3 + $0x74] sm:$0xf]
    %v125 = vld [vmem:[%s3 + $0x78] sm:$0xf]
    %v126 = vld [vmem:[%s3 + $0x7c] sm:$0xf]
    %v129 = vunpack.c.l.b16 %v93
    %v130 = vunpack.c.l.b16 %v94
    %v131 = vpack.c.b16 %v130, %v129
    %v164 = vunpack.c.l.b16 %v95
    %v165 = vunpack.c.l.b16 %v96
    %v166 = vunpack.c.l.b16 %v97
    %v167 = vunpack.c.l.b16 %v98
    %v168 = vunpack.c.l.b16 %v99
    %v169 = vunpack.c.l.b16 %v100
    %v170 = vunpack.c.l.b16 %v101
    %v171 = vunpack.c.l.b16 %v102
    %v172 = vunpack.c.l.b16 %v103
    %v173 = vunpack.c.l.b16 %v104
    %v174 = vunpack.c.l.b16 %v105
    %v175 = vunpack.c.l.b16 %v106
    %v176 = vunpack.c.l.b16 %v107
    %v177 = vunpack.c.l.b16 %v108
    %v178 = vunpack.c.l.b16 %v109
    %v179 = vunpack.c.l.b16 %v110
    %v180 = vunpack.c.l.b16 %v111
    %v181 = vunpack.c.l.b16 %v112
    %v182 = vunpack.c.l.b16 %v113
    %v183 = vunpack.c.l.b16 %v114
    %v184 = vunpack.c.l.b16 %v115
    %v185 = vunpack.c.l.b16 %v116
    %v186 = vunpack.c.l.b16 %v117
    %v187 = vunpack.c.l.b16 %v118
    %v188 = vunpack.c.l.b16 %v119
    %v189 = vunpack.c.l.b16 %v120
    %v190 = vunpack.c.l.b16 %v121
    %v191 = vunpack.c.l.b16 %v122
    %v192 = vunpack.c.l.b16 %v123
    %v193 = vunpack.c.l.b16 %v124
    %v194 = vunpack.c.l.b16 %v125
    %v195 = vunpack.c.l.b16 %v126
    %v196 = vpack.c.b16 %v165, %v164
    %v197 = vpack.c.b16 %v167, %v166
    %v198 = vpack.c.b16 %v169, %v168
    %v199 = vpack.c.b16 %v171, %v170
    %v200 = vpack.c.b16 %v173, %v172
    %v201 = vpack.c.b16 %v175, %v174
    %v202 = vpack.c.b16 %v177, %v176
    %v203 = vpack.c.b16 %v179, %v178
    %v204 = vpack.c.b16 %v181, %v180
    %v205 = vpack.c.b16 %v183, %v182
    %v206 = vpack.c.b16 %v185, %v184
    %v207 = vpack.c.b16 %v187, %v186
    %v208 = vpack.c.b16 %v189, %v188
    %v209 = vpack.c.b16 %v191, %v190
    %v210 = vpack.c.b16 %v193, %v192
    %v211 = vpack.c.b16 %v195, %v194
    %vm212 = vcmask 261120
    %v214 = vsel %vm212, %v131, 0
    %v217 = vsel %vm212, %v196, 0
    %v220 = vsel %vm212, %v197, 0
    %v223 = vsel %vm212, %v198, 0
    %v226 = vsel %vm212, %v199, 0
    %v229 = vsel %vm212, %v200, 0
    %v232 = vsel %vm212, %v201, 0
    %v235 = vsel %vm212, %v202, 0
    %v238 = vsel %vm212, %v203, 0
    %v241 = vsel %vm212, %v204, 0
    %v244 = vsel %vm212, %v205, 0
    %v247 = vsel %vm212, %v206, 0
    %v250 = vsel %vm212, %v207, 0
    %v253 = vsel %vm212, %v208, 0
    %v256 = vsel %vm212, %v209, 0
    %v259 = vsel %vm212, %v210, 0
    %v262 = vsel %vm212, %v211, 0
    %264 = vmatpush.bf16.xpose.msra.mxu0 %v238
    %265 = vmatpush.bf16.xpose.msra.mxu0 %v235
    %266 = vmatpush.bf16.xpose.msra.mxu0 %v232
    %267 = vmatpush.bf16.xpose.msra.mxu0 %v229
    %268 = vmatpush.bf16.xpose.msra.mxu0 %v226
    %269 = vmatpush.bf16.xpose.msra.mxu0 %v223
    %270 = vmatpush.bf16.xpose.msra.mxu0 %v220
    %271 = vmatpush.bf16.xpose.msra.mxu0 %v217
    %272 = vmatmul.bf16.gmra.mxu0 %v214
    %v273 = vpop.f32.mrf.mxu0
    %v274 = vadd.f32 0.0, %v273
    %v275 = vpop.f32.mrf.mxu0
    %v276 = vadd.f32 0.0, %v275
    %277 = vdwg.mxu0
    %278 = vmatpush.bf16.xpose.msra.mxu0 %v262
    %279 = vmatpush.bf16.xpose.msra.mxu0 %v259
    %280 = vmatpush.bf16.xpose.msra.mxu0 %v256
    %281 = vmatpush.bf16.xpose.msra.mxu0 %v253
    %282 = vmatpush.bf16.xpose.msra.mxu0 %v250
    %283 = vmatpush.bf16.xpose.msra.mxu0 %v247
    %284 = vmatpush.bf16.xpose.msra.mxu0 %v244
    %285 = vmatpush.bf16.xpose.msra.mxu0 %v241
    %286 = vmatmul.bf16.gmra.mxu0 %v214
    %v287 = vpop.f32.mrf.mxu0
    %v288 = vadd.f32 0.0, %v287
    %v289 = vpop.f32.mrf.mxu0
    %v290 = vadd.f32 0.0, %v289
    %291 = vdwg.mxu0
    %292 = vst [vmem:[#allocation3] sm:$0xff] %v274
    %293 = vst [vmem:[#allocation3 + $0x8] sm:$0xff] %v288
    %294 = vst [vmem:[#allocation3 + $0x10] sm:$0xff] %v276
    %295 = vst [vmem:[#allocation3 + $0x18] sm:$0xff] %v290
    // Predicated region
    $region22: #{tpu_custom_call.1} parent=1 // pred_check
      _
    $region23: #{tpu_custom_call.1} parent=1 // pred_check_branch
      %297 = sbr.rel (0) target = $region25
    $region24: #{tpu_custom_call.1} parent=1 // pred_region
      %299 = vsyncadd [#allocation4], 0
      %s300 = sshll.u32 [#allocation3], 4
      %s301 = int_to_ptr.vmem [resolvable:$true] %s300
      %s302 = sshll.u32 %s4, 4
      %s303 = int_to_ptr.hbm [resolvable:$true] %s302
      %308 = dma.vmem_to_hbm [thread:$0]  %s301, 512, %s303, [#allocation4], 256, 256, 16
    $region25: #{tpu_custom_call.1} parent=1 // pred_fallthru
      _
    // Predicated region
    $region26: #{tpu_custom_call.1} parent=1 // pred_check
      _
    $region27: #{tpu_custom_call.1} parent=1 // pred_check_branch
      %310 = sbr.rel (0) target = $region29
    $region28: #{tpu_custom_call.1} parent=1 // pred_region
      %312 = dma.done [#allocation4], 512
    $region29: #{tpu_custom_call.1} parent=1 // pred_fallthru
      _
    %313 = vsyncpa [#allocation4], 1

</llo_original>
